<compile_context>
chip_gen: v6e
topology: v6e:2x2x1
jax: 0.10.0
libtpu: 0.0.40
codegen_flags: <defaults>
</compile_context>

<pallas_src>
import functools

import jax
import jax.numpy as jnp
from jax import lax
from jax.experimental import pallas as pl
from jax.experimental.pallas import tpu as pltpu

NEG_FILL = -100000000000.0  # exact constant used by select_output_head


def _round_up(x, m):
    return ((x + m - 1) // m) * m


def _backbone_kernel(*refs, num_classes_per_head, multi_head):
    if multi_head:
        x_ref, w1_ref, b1_ref, w2_ref, b2_ref, head_ref, o_ref = refs
    else:
        x_ref, w1_ref, b1_ref, w2_ref, b2_ref, o_ref = refs
        head_ref = None

    # block 0: Linear + ReLU  (MXU in compute dtype, f32 accumulate / elementwise)
    h = jnp.dot(x_ref[...], w1_ref[...], preferred_element_type=jnp.float32)
    h = jnp.maximum(h + b1_ref[...], 0.0)

    # block 1: Linear classifier
    logits = jnp.dot(h.astype(w2_ref.dtype), w2_ref[...],
                     preferred_element_type=jnp.float32)
    logits = logits + b2_ref[...]

    if multi_head:
        op = logits.shape[1]
        # (1, OUTp) iota broadcast against (TILE_B, 1) head offsets: masking
        # epilogue stays in a handful of vregs.
        cls_idx = lax.broadcasted_iota(jnp.int32, (1, op), 1)
        head = head_ref[...]                            # (TILE_B, 1) int32, 1-indexed
        off1 = (head - 1) * num_classes_per_head
        off2 = off1 + num_classes_per_head              # one multiply, one add
        keep = (cls_idx >= off1) & (cls_idx < off2)
        logits = jnp.where(keep, logits, NEG_FILL)

    o_ref[...] = logits.astype(o_ref.dtype)


def continual_backbone_forward(x, w1, b1, w2, b2, head_ids=None, *,
                               num_classes_per_head=None, multi_head=False,
                               tile_b=1024, compute_dtype=jnp.bfloat16,
                               out_dtype=jnp.float32):
    """x: [B, D_in]; head_ids: [B] (1-indexed). Returns out_dtype [B, num_heads*C]."""
    if multi_head and not num_classes_per_head:
        raise ValueError(
            "a Multi-Head Backbone is initiated without defining num_classes_per_head.")
    if multi_head and head_ids is None:
        raise ValueError("multi_head=True requires head_ids.")

    B, D = x.shape
    H = w1.shape[1]
    OUT = w2.shape[1]

    # lane-dense padding of every feature axis (exact: zero pads)
    Dp = _round_up(D, 128)
    Hp = _round_up(H, 128)
    OUTp = _round_up(OUT, 128)

    c_item = jnp.dtype(compute_dtype).itemsize
    o_item = jnp.dtype(out_dtype).itemsize

    # physical VMEM budget: 128 MiB on v5e/v6e, 64 MiB per TC on v7x
    try:
        phys_vmem = int(pltpu.get_tpu_info().vmem_capacity_bytes)
    except Exception:
        phys_vmem = 64 << 20                           # conservative (v7x) fallback
    budget = phys_vmem - (8 << 20)                     # headroom for compiler scratch

    def footprint(tb):
        xb = 2 * tb * Dp * c_item                      # x: double-buffered stream
        ob = 2 * tb * OUTp * o_item                    # out: double-buffered writeback
        hb = (2 * tb * 128 * 4) if multi_head else 0   # (tb,1) int32, lane-padded
        wb = (Dp * Hp + Hp * OUTp) * c_item + (Hp + OUTp) * 4   # single-buffered resident
        tmp = tb * Hp * (4 + c_item) + 2 * tb * OUTp * 4        # h f32 + cast, logits f32
        return xb + ob + hb + wb + tmp

    # batch tiling: minimize padding, multiple of 16 (bf16 sublane packing),
    # and keep >=2 grid steps when B permits (v7x megacore split of the batch axis).
    tile_b = max(16, tile_b)
    while tile_b > 16 and footprint(tile_b) > budget:
        tile_b //= 2
    n_tiles = max(pl.cdiv(B, tile_b), min(2, pl.cdiv(B, 16)))
    TILE_B = _round_up(pl.cdiv(B, n_tiles), 16)
    Bp = n_tiles * TILE_B

    # cast to compute dtype BEFORE padding: single pad pass, no extra f32 copy of x
    xp = jnp.pad(x.astype(compute_dtype), ((0, Bp - B), (0, Dp - D)))
    w1p = jnp.pad(w1.astype(compute_dtype), ((0, Dp - D), (0, Hp - H)))
    b1p = jnp.pad(b1.astype(jnp.float32), (0, Hp - H)).reshape(1, Hp)
    w2p = jnp.pad(w2.astype(compute_dtype), ((0, Hp - H), (0, OUTp - OUT)))
    b2p = jnp.pad(b2.astype(jnp.float32), (0, OUTp - OUT)).reshape(1, OUTp)

    resident = pl.Buffered(1)   # constant index_map -> single VMEM buffer

    in_specs = [
        pl.BlockSpec((TILE_B, Dp), lambda i: (i, 0)),                        # x: streamed
        pl.BlockSpec((Dp, Hp), lambda i: (0, 0), pipeline_mode=resident),    # W1: resident
        pl.BlockSpec((1, Hp), lambda i: (0, 0), pipeline_mode=resident),     # b1: resident
        pl.BlockSpec((Hp, OUTp), lambda i: (0, 0), pipeline_mode=resident),  # W2: resident
        pl.BlockSpec((1, OUTp), lambda i: (0, 0), pipeline_mode=resident),   # b2: resident
    ]
    args = [xp, w1p, b1p, w2p, b2p]

    if multi_head:
        head_2d = jnp.pad(head_ids.astype(jnp.int32), (0, Bp - B)).reshape(Bp, 1)
        in_specs.append(pl.BlockSpec((TILE_B, 1), lambda i: (i, 0)))
        args.append(head_2d)
    # (single-head path: head_ids never DMA'd at all)

    out_spec = pl.BlockSpec((TILE_B, OUTp), lambda i: (i, 0))

    # derived VMEM limit: footprint + 25% headroom, clamped to the chip budget
    vmem_limit = int(min(max(footprint(TILE_B) * 1.25 + (2 << 20), 16 << 20), budget))

    flops = 2 * Bp * (Dp * Hp + Hp * OUTp)
    bytes_accessed = (xp.size * c_item + (w1p.size + w2p.size) * c_item
                      + (b1p.size + b2p.size) * 4 + Bp * OUTp * o_item)

    kernel = functools.partial(
        _backbone_kernel,
        num_classes_per_head=num_classes_per_head,
        multi_head=multi_head,
    )

    out = pl.pallas_call(
        kernel,
        out_shape=jax.ShapeDtypeStruct((Bp, OUTp), out_dtype),
        grid=(n_tiles,),
        in_specs=in_specs,
        out_specs=out_spec,
        compiler_params=pltpu.CompilerParams(
            dimension_semantics=("parallel",),          # sharded across TCs on v7x
            vmem_limit_bytes=vmem_limit,
        ),
        cost_estimate=pl.CostEstimate(
            flops=flops, transcendentals=0, bytes_accessed=bytes_accessed),
    )(*args)

    return out[:B, :OUT]


def _reference(x, w1, b1, w2, b2, head_ids, *, num_classes_per_head, multi_head):
    h = jnp.maximum(x @ w1 + b1, 0.0)
    logits = h @ w2 + b2
    if multi_head:
        out_dim = logits.shape[1]
        cls_idx = jnp.arange(out_dim)[None, :]
        off1 = ((head_ids - 1) * num_classes_per_head)[:, None]
        off2 = (head_ids * num_classes_per_head)[:, None]
        keep = (cls_idx >= off1) & (cls_idx < off2)
        logits = jnp.where(keep, logits, NEG_FILL)
    return logits


if __name__ == "__main__":
    # small, deterministic config
    batch = 2
    d_in = 32
    hidden = 32
    num_heads = 2
    num_classes_per_head = 4
    out_dim = num_heads * num_classes_per_head

    key = jax.random.PRNGKey(0)
    kx, k1, k2, k3, k4 = jax.random.split(key, 5)

    x = jax.random.normal(kx, (batch, d_in), dtype=jnp.float32)
    w1 = jax.random.normal(k1, (d_in, hidden), dtype=jnp.float32) * 0.1
    b1 = jax.random.normal(k2, (hidden,), dtype=jnp.float32) * 0.1
    w2 = jax.random.normal(k3, (hidden, out_dim), dtype=jnp.float32) * 0.1
    b2 = jax.random.normal(k4, (out_dim,), dtype=jnp.float32) * 0.1
    head_ids = jnp.array([1, 2], dtype=jnp.int32)  # 1-indexed, as in the PyTorch code

    ref = _reference(x, w1, b1, w2, b2, head_ids,
                     num_classes_per_head=num_classes_per_head, multi_head=True)

    # f32 compute path: bit-accurate check of the kernel structure
    out_f32 = continual_backbone_forward(
        x, w1, b1, w2, b2, head_ids,
        num_classes_per_head=num_classes_per_head, multi_head=True,
        compute_dtype=jnp.float32)
    out_f32 = jax.block_until_ready(out_f32)
    assert out_f32.shape == (batch, out_dim)
    assert jnp.allclose(out_f32, ref, atol=1e-4, rtol=1e-4), "f32 mismatch vs reference"

    # default bf16 MXU path (production config): looser tolerance vs f32 reference
    out_bf16 = continual_backbone_forward(
        x, w1, b1, w2, b2, head_ids,
        num_classes_per_head=num_classes_per_head, multi_head=True)
    out_bf16 = jax.block_until_ready(out_bf16)
    assert jnp.allclose(out_bf16, ref, atol=5e-2, rtol=5e-2), "bf16 mismatch vs reference"

    # single-head path (no masking, no head_ids DMA)
    out_single = continual_backbone_forward(
        x, w1, b1, w2, b2,
        num_classes_per_head=num_classes_per_head, multi_head=False,
        compute_dtype=jnp.float32)
    out_single = jax.block_until_ready(out_single)
    ref_single = _reference(x, w1, b1, w2, b2, head_ids,
                            num_classes_per_head=num_classes_per_head, multi_head=False)
    assert jnp.allclose(out_single, ref_single, atol=1e-4, rtol=1e-4)

    # multi-tile path (grid >= 2 steps, padded batch rows, padded head_ids)
    batch2 = 40
    kx2, kh2 = jax.random.split(jax.random.PRNGKey(1))
    x2 = jax.random.normal(kx2, (batch2, d_in), dtype=jnp.float32)
    head_ids2 = (jax.random.randint(kh2, (batch2,), 0, num_heads) + 1).astype(jnp.int32)
    ref2 = _reference(x2, w1, b1, w2, b2, head_ids2,
                      num_classes_per_head=num_classes_per_head, multi_head=True)
    out2 = continual_backbone_forward(
        x2, w1, b1, w2, b2, head_ids2,
        num_classes_per_head=num_classes_per_head, multi_head=True,
        compute_dtype=jnp.float32)
    out2 = jax.block_until_ready(out2)
    assert out2.shape == (batch2, out_dim)
    assert jnp.allclose(out2, ref2, atol=1e-4, rtol=1e-4), "multi-tile mismatch vs reference"

    print("KERNEL_OK")
</pallas_src>

<mosaic_0001>
module attributes {stable_mosaic.version = 11 : i64} {
  func.func @_backbone_kernel(%arg0: i32, %arg1: memref<16x128xf32, #tpu.memory_space<vmem>>, %arg2: memref<128x128xf32, #tpu.memory_space<vmem>>, %arg3: memref<1x128xf32, #tpu.memory_space<vmem>>, %arg4: memref<128x128xf32, #tpu.memory_space<vmem>>, %arg5: memref<1x128xf32, #tpu.memory_space<vmem>>, %arg6: memref<16x1xi32, #tpu.memory_space<vmem>>, %arg7: memref<16x128xf32, #tpu.memory_space<vmem>>) attributes {dimension_semantics = [#tpu.dimension_semantics<parallel>], iteration_bounds = array<i64: 1>, scalar_prefetch = 0 : i64, scratch_operands = 0 : i64, tpu.core_type = #tpu.core_type<tc>, window_params = [{transform_indices = @transform_0, window_bounds = array<i64: 16, 128>}, {pipeline_mode = #tpu.pipeline_mode<synchronous>, transform_indices = @transform_1, window_bounds = array<i64: 128, 128>}, {pipeline_mode = #tpu.pipeline_mode<synchronous>, transform_indices = @transform_2, window_bounds = array<i64: 1, 128>}, {pipeline_mode = #tpu.pipeline_mode<synchronous>, transform_indices = @transform_3, window_bounds = array<i64: 128, 128>}, {pipeline_mode = #tpu.pipeline_mode<synchronous>, transform_indices = @transform_4, window_bounds = array<i64: 1, 128>}, {transform_indices = @transform_5, window_bounds = array<i64: 16, 1>}, {transform_indices = @transform_6, window_bounds = array<i64: 16, 128>}]} {
    %c0 = arith.constant 0 : index
    %c0_0 = arith.constant 0 : index
    %0 = vector.load %arg1[%c0, %c0_0] : memref<16x128xf32, #tpu.memory_space<vmem>>, vector<16x128xf32>
    %c0_1 = arith.constant 0 : index
    %c0_2 = arith.constant 0 : index
    %1 = vector.load %arg2[%c0_1, %c0_2] : memref<128x128xf32, #tpu.memory_space<vmem>>, vector<128x128xf32>
    %cst = arith.constant dense<0.000000e+00> : vector<16x128xf32>
    %2 = tpu.matmul %0, %1, %cst {dimension_numbers = #tpu.dot_dimension_numbers<[1], [0], [0], [1], [0, 0, 1, 1], [], []>} : vector<16x128xf32>, vector<128x128xf32>, vector<16x128xf32> -> vector<16x128xf32>
    %c0_3 = arith.constant 0 : index
    %c0_4 = arith.constant 0 : index
    %3 = vector.load %arg3[%c0_3, %c0_4] : memref<1x128xf32, #tpu.memory_space<vmem>>, vector<1x128xf32>
    %4 = vector.broadcast %3 : vector<1x128xf32> to vector<16x128xf32>
    %5 = arith.addf %2, %4 : vector<16x128xf32>
    %cst_5 = arith.constant 0.000000e+00 : f32
    %6 = vector.broadcast %cst_5 : f32 to vector<16x128xf32>
    %7 = arith.maximumf %5, %6 : vector<16x128xf32>
    %c0_6 = arith.constant 0 : index
    %c0_7 = arith.constant 0 : index
    %8 = vector.load %arg4[%c0_6, %c0_7] : memref<128x128xf32, #tpu.memory_space<vmem>>, vector<128x128xf32>
    %cst_8 = arith.constant dense<0.000000e+00> : vector<16x128xf32>
    %9 = tpu.matmul %7, %8, %cst_8 {dimension_numbers = #tpu.dot_dimension_numbers<[1], [0], [0], [1], [0, 0, 1, 1], [], []>} : vector<16x128xf32>, vector<128x128xf32>, vector<16x128xf32> -> vector<16x128xf32>
    %c0_9 = arith.constant 0 : index
    %c0_10 = arith.constant 0 : index
    %10 = vector.load %arg5[%c0_9, %c0_10] : memref<1x128xf32, #tpu.memory_space<vmem>>, vector<1x128xf32>
    %11 = vector.broadcast %10 : vector<1x128xf32> to vector<16x128xf32>
    %12 = arith.addf %9, %11 : vector<16x128xf32>
    %13 = tpu.iota {dimensions = array<i32: 1>} : vector<1x128xi32>
    %c0_11 = arith.constant 0 : index
    %c0_12 = arith.constant 0 : index
    %14 = vector.load %arg6[%c0_11, %c0_12] : memref<16x1xi32, #tpu.memory_space<vmem>>, vector<16x1xi32>
    %c1_i32 = arith.constant 1 : i32
    %15 = vector.broadcast %c1_i32 : i32 to vector<16x1xi32>
    %16 = arith.subi %14, %15 : vector<16x1xi32>
    %c4_i32 = arith.constant 4 : i32
    %17 = vector.broadcast %c4_i32 : i32 to vector<16x1xi32>
    %18 = arith.muli %16, %17 : vector<16x1xi32>
    %c4_i32_13 = arith.constant 4 : i32
    %19 = vector.broadcast %c4_i32_13 : i32 to vector<16x1xi32>
    %20 = arith.addi %18, %19 : vector<16x1xi32>
    %21 = vector.broadcast %13 : vector<1x128xi32> to vector<16x128xi32>
    %22 = vector.broadcast %18 : vector<16x1xi32> to vector<16x128xi32>
    %23 = arith.cmpi sge, %21, %22 : vector<16x128xi32>
    %24 = vector.broadcast %13 : vector<1x128xi32> to vector<16x128xi32>
    %25 = vector.broadcast %20 : vector<16x1xi32> to vector<16x128xi32>
    %26 = arith.cmpi slt, %24, %25 : vector<16x128xi32>
    %27 = arith.andi %23, %26 : vector<16x128xi1>
    %cst_14 = arith.constant -9.99999979E+10 : f32
    %28 = vector.broadcast %cst_14 : f32 to vector<16x128xf32>
    %29 = arith.select %27, %12, %28 : vector<16x128xi1>, vector<16x128xf32>
    %c0_15 = arith.constant 0 : index
    %c0_16 = arith.constant 0 : index
    %30 = vector.load %arg7[%c0_15, %c0_16] : memref<16x128xf32, #tpu.memory_space<vmem>>, vector<16x128xf32>
    tpu.vector_store %arg7[%c0_15, %c0_16], %29 {strides = array<i32>} : memref<16x128xf32, #tpu.memory_space<vmem>>, vector<16x128xf32>,
    return
  }
  func.func @transform_0(%arg0: i32) -> (i32, i32) {
    %c0_i32 = arith.constant 0 : i32
    %c0_i32_0 = arith.constant 0 : i32
    return %arg0, %c0_i32 : i32, i32
  }
  func.func @transform_1(%arg0: i32) -> (i32, i32) {
    %c0_i32 = arith.constant 0 : i32
    %c0_i32_0 = arith.constant 0 : i32
    %c0_i32_1 = arith.constant 0 : i32
    return %c0_i32, %c0_i32_0 : i32, i32
  }
  func.func @transform_2(%arg0: i32) -> (i32, i32) {
    %c0_i32 = arith.constant 0 : i32
    %c0_i32_0 = arith.constant 0 : i32
    %c0_i32_1 = arith.constant 0 : i32
    return %c0_i32, %c0_i32_0 : i32, i32
  }
  func.func @transform_3(%arg0: i32) -> (i32, i32) {
    %c0_i32 = arith.constant 0 : i32
    %c0_i32_0 = arith.constant 0 : i32
    %c0_i32_1 = arith.constant 0 : i32
    return %c0_i32, %c0_i32_0 : i32, i32
  }
  func.func @transform_4(%arg0: i32) -> (i32, i32) {
    %c0_i32 = arith.constant 0 : i32
    %c0_i32_0 = arith.constant 0 : i32
    %c0_i32_1 = arith.constant 0 : i32
    return %c0_i32, %c0_i32_0 : i32, i32
  }
  func.func @transform_5(%arg0: i32) -> (i32, i32) {
    %c0_i32 = arith.constant 0 : i32
    %c0_i32_0 = arith.constant 0 : i32
    return %arg0, %c0_i32 : i32, i32
  }
  func.func @transform_6(%arg0: i32) -> (i32, i32) {
    %c0_i32 = arith.constant 0 : i32
    %c0_i32_0 = arith.constant 0 : i32
    return %arg0, %c0_i32 : i32, i32
  }
}

</mosaic_0001>

<llo_original>
// kernel: tpu_custom_call.1
$region0: #{tpu_custom_call.1}
  #allocation0 [shape = 'u32[]', space=smem, size = 0x4, offset = 0x4, fixed_abs, tag = 'smem constant byte address 0x4 - core index']
  #allocation1 [shape = 'u32[144,128]{1,0:T(1,128)}', space=vmem, size = 0x12000, scoped, tag = 'internal scratch']
  %s0 = inlined_call_operand.vmem [shape: f32[16,128], index: 0, kind: input, shape index: {}]
  %s1 = inlined_call_operand.hbm [shape: f32[128,128], index: 1, kind: input, shape index: {}]
  %s2 = inlined_call_operand.vmem [shape: f32[1,128], index: 2, kind: input, shape index: {}]
  %s3 = inlined_call_operand.hbm [shape: f32[128,128], index: 3, kind: input, shape index: {}]
  %s4 = inlined_call_operand.vmem [shape: f32[1,128], index: 4, kind: input, shape index: {}]
  %s5 = inlined_call_operand.vmem [shape: s32[16,1], index: 5, kind: input, shape index: {}]
  %s6 = inlined_call_operand.hbm [shape: f32[16,128], index: 6, kind: output, shape index: {}]
  %s7 = sld [smem:[#allocation0]]
  $region42: #{tpu_custom_call.1} parent=0
    _
  %s9 = ssub.s32 1, %s7
  %s10 = scalar_select 0, %s9, %s7
  $region1: #{tpu_custom_call.1} parent=0
    #allocation2 [shape = 'u8[65536]{0}', space=vmem, size = 0x10000, scoped, tag = 'input window, operand 1, single buffered']
    #allocation3 [shape = 's32[1]{0}', space=sflag, size = 0x4, scoped, tag = 'scoped memory for tpu_custom_call.1']
    #allocation4 [shape = 's32[1]{0}', space=sflag, size = 0x4, scoped, tag = 'scoped memory for tpu_custom_call.1']
    #allocation5 [shape = 'u8[65536]{0}', space=vmem, size = 0x10000, scoped, tag = 'input window, operand 3, single buffered']
    #allocation6 [shape = 's32[1]{0}', space=sflag, size = 0x4, scoped, tag = 'scoped memory for tpu_custom_call.1']
    #allocation7 [shape = 'u8[8192]{0}', space=vmem, size = 0x2000, scoped, tag = 'output window, operand 0, single buffered']
    %11 = vsyncpa [#allocation3], 0
    %12 = vsyncpa [#allocation6], 0
    %13 = vsyncpa [#allocation4], 0
    // Predicated region
    $region2: #{tpu_custom_call.1} parent=1 // pred_check
      _
    $region3: #{tpu_custom_call.1} parent=1 // pred_check_branch
      %15 = sbr.rel (0) target = $region5
    $region4: #{tpu_custom_call.1} parent=1 // pred_region
      _
    $region5: #{tpu_custom_call.1} parent=1 // pred_fallthru
      _
    // Predicated region
    $region6: #{tpu_custom_call.1} parent=1 // pred_check
      _
    $region7: #{tpu_custom_call.1} parent=1 // pred_check_branch
      %17 = sbr.rel (0) target = $region9
    $region8: #{tpu_custom_call.1} parent=1 // pred_region
      %s19 = ssub.s32 2048, 2048
      %20 = vsyncadd [#allocation3], %s19
      %s21 = sshll.u32 [#allocation2], 4
      %s22 = int_to_ptr.vmem [resolvable:$true] %s21
      %27 = dma.hbm_to_vmem [thread:$0]  %s1, 2048, %s22, [#allocation3], 128, 128, 8
    $region9: #{tpu_custom_call.1} parent=1 // pred_fallthru
      _
    // Predicated region
    $region10: #{tpu_custom_call.1} parent=1 // pred_check
      _
    $region11: #{tpu_custom_call.1} parent=1 // pred_check_branch
      %29 = sbr.rel (0) target = $region13
    $region12: #{tpu_custom_call.1} parent=1 // pred_region
      _
    $region13: #{tpu_custom_call.1} parent=1 // pred_fallthru
      _
    // Predicated region
    $region14: #{tpu_custom_call.1} parent=1 // pred_check
      _
    $region15: #{tpu_custom_call.1} parent=1 // pred_check_branch
      %31 = sbr.rel (0) target = $region17
    $region16: #{tpu_custom_call.1} parent=1 // pred_region
      %s33 = ssub.s32 2048, 2048
      %34 = vsyncadd [#allocation6], %s33
      %s35 = sshll.u32 [#allocation5], 4
      %s36 = int_to_ptr.vmem [resolvable:$true] %s35
      %41 = dma.hbm_to_vmem [thread:$0]  %s3, 2048, %s36, [#allocation6], 128, 128, 8
    $region17: #{tpu_custom_call.1} parent=1 // pred_fallthru
      _
    // Predicated region
    $region18: #{tpu_custom_call.1} parent=1 // pred_check
      _
    $region19: #{tpu_custom_call.1} parent=1 // pred_check_branch
      %43 = sbr.rel (0) target = $region21
    $region20: #{tpu_custom_call.1} parent=1 // pred_region
      _
    $region21: #{tpu_custom_call.1} parent=1 // pred_fallthru
      _
    // Predicated region
    $region22: #{tpu_custom_call.1} parent=1 // pred_check
      _
    $region23: #{tpu_custom_call.1} parent=1 // pred_check_branch
      %45 = sbr.rel (0) target = $region25
    $region24: #{tpu_custom_call.1} parent=1 // pred_region
      _
    $region25: #{tpu_custom_call.1} parent=1 // pred_fallthru
      _
    // Predicated region
    $region26: #{tpu_custom_call.1} parent=1 // pred_check
      _
    $region27: #{tpu_custom_call.1} parent=1 // pred_check_branch
      %47 = sbr.rel (0) target = $region29
    $region28: #{tpu_custom_call.1} parent=1 // pred_region
      %48 = dma.done [#allocation3], 2048
    $region29: #{tpu_custom_call.1} parent=1 // pred_fallthru
      _
    // Predicated region
    $region30: #{tpu_custom_call.1} parent=1 // pred_check
      _
    $region31: #{tpu_custom_call.1} parent=1 // pred_check_branch
      %50 = sbr.rel (0) target = $region33
    $region32: #{tpu_custom_call.1} parent=1 // pred_region
      %51 = dma.done [#allocation6], 2048
    $region33: #{tpu_custom_call.1} parent=1 // pred_fallthru
      _
    %v52 = vld [vmem:[%s0] sm:$0xff]
    %v53 = vld [vmem:[%s0 + $0x8] sm:$0xff]
    %v54 = vld [vmem:[#allocation2] sm:$0xff]
    %v55 = vld [vmem:[#allocation2 + $0x8] sm:$0xff]
    %v56 = vld [vmem:[#allocation2 + $0x10] sm:$0xff]
    %v57 = vld [vmem:[#allocation2 + $0x18] sm:$0xff]
    %v58 = vld [vmem:[#allocation2 + $0x20] sm:$0xff]
    %v59 = vld [vmem:[#allocation2 + $0x28] sm:$0xff]
    %v60 = vld [vmem:[#allocation2 + $0x30] sm:$0xff]
    %v61 = vld [vmem:[#allocation2 + $0x38] sm:$0xff]
    %v62 = vld [vmem:[#allocation2 + $0x40] sm:$0xff]
    %v63 = vld [vmem:[#allocation2 + $0x48] sm:$0xff]
    %v64 = vld [vmem:[#allocation2 + $0x50] sm:$0xff]
    %v65 = vld [vmem:[#allocation2 + $0x58] sm:$0xff]
    %v66 = vld [vmem:[#allocation2 + $0x60] sm:$0xff]
    %v67 = vld [vmem:[#allocation2 + $0x68] sm:$0xff]
    %v68 = vld [vmem:[#allocation2 + $0x70] sm:$0xff]
    %v69 = vld [vmem:[#allocation2 + $0x78] sm:$0xff]
    %v70 = vld [vmem:[%s2] sm:$0x1]
    %v72 = vlaneseq
    %v73 = vshrl.u32 %v72, 7
    %v74 = vsub.s32 0, %v73
    %v75 = vrot.slane %v70, %v74
    %77 = vmatprep.subr.mxu0 0.0
    %78 = vmatpush1.msra.mxu0 %v69
    %79 = vmatprep.subr.mxu0 0.0
    %80 = vmatpush1.msra.mxu0 %v68
    %81 = vmatprep.subr.mxu0 0.0
    %82 = vmatpush1.msra.mxu0 %v67
    %83 = vmatprep.subr.mxu0 0.0
    %84 = vmatpush1.msra.mxu0 %v66
    %85 = vmatprep.subr.mxu0 0.0
    %86 = vmatpush1.msra.mxu0 %v65
    %87 = vmatprep.subr.mxu0 0.0
    %88 = vmatpush1.msra.mxu0 %v64
    %89 = vmatprep.subr.mxu0 0.0
    %90 = vmatpush1.msra.mxu0 %v63
    %91 = vmatprep.subr.mxu0 0.0
    %92 = vmatpush1.msra.mxu0 %v62
    %93 = vmatprep.subr.mxu0 0.0
    %94 = vmatpush1.msra.mxu0 %v61
    %95 = vmatprep.subr.mxu0 0.0
    %96 = vmatpush1.msra.mxu0 %v60
    %97 = vmatprep.subr.mxu0 0.0
    %98 = vmatpush1.msra.mxu0 %v59
    %99 = vmatprep.subr.mxu0 0.0
    %100 = vmatpush1.msra.mxu0 %v58
    %101 = vmatprep.subr.mxu0 0.0
    %102 = vmatpush1.msra.mxu0 %v57
    %103 = vmatprep.subr.mxu0 0.0
    %104 = vmatpush1.msra.mxu0 %v56
    %105 = vmatprep.subr.mxu0 0.0
    %106 = vmatpush1.msra.mxu0 %v55
    %107 = vmatprep.subr.mxu0 0.0
    %108 = vmatpush1.msra.mxu0 %v54
    %109 = vmatprep.subr.mxu0 0.0
    %110 = vmatpush2.msra.mxu0 0.0
    %111 = vmatprep.subr.mxu0 0.0
    %112 = vmatpush2.msra.mxu0 0.0
    %113 = vmatprep.subr.mxu0 0.0
    %114 = vmatpush2.msra.mxu0 0.0
    %115 = vmatprep.subr.mxu0 0.0
    %116 = vmatpush2.msra.mxu0 0.0
    %117 = vmatprep.subr.mxu0 0.0
    %118 = vmatpush2.msra.mxu0 0.0
    %119 = vmatprep.subr.mxu0 0.0
    %120 = vmatpush2.msra.mxu0 0.0
    %121 = vmatprep.subr.mxu0 0.0
    %122 = vmatpush2.msra.mxu0 0.0
    %123 = vmatprep.subr.mxu0 0.0
    %124 = vmatpush2.msra.mxu0 0.0
    %125 = vmatprep.subr.mxu0 0.0
    %126 = vmatpush2.msra.mxu0 0.0
    %127 = vmatprep.subr.mxu0 0.0
    %128 = vmatpush2.msra.mxu0 0.0
    %129 = vmatprep.subr.mxu0 0.0
    %130 = vmatpush2.msra.mxu0 0.0
    %131 = vmatprep.subr.mxu0 0.0
    %132 = vmatpush2.msra.mxu0 0.0
    %133 = vmatprep.subr.mxu0 0.0
    %134 = vmatpush2.msra.mxu0 0.0
    %135 = vmatprep.subr.mxu0 0.0
    %136 = vmatpush2.msra.mxu0 0.0
    %137 = vmatprep.subr.mxu0 0.0
    %138 = vmatpush2.msra.mxu0 0.0
    %139 = vmatprep.subr.mxu0 0.0
    %140 = vmatpush2.msra.mxu0 0.0
    %141 = vmatprep.mubr.f32.mxu0 0.0
    %142 = vmatmul.mubr.f32.gmra.mxu0 %v52
    %v143 = vpop.f32.mrf.mxu0
    %v144 = vadd.f32 %v75, %v143
    %v145 = vpop.f32.mrf.mxu0
    %146 = vmatprep.mubr.f32.mxu0 0.0
    %147 = vmatmul.mubr.f32.gmra.mxu0 %v53
    %v148 = vpop.f32.mrf.mxu0
    %v149 = vadd.f32 %v75, %v148
    %v150 = vpop.f32.mrf.mxu0
    %151 = vdwg.mxu0
    %v152 = vmax.f32 %v144, 0.0
    %v153 = vmax.f32 %v149, 0.0
    %v154 = vld [vmem:[#allocation5] sm:$0xff]
    %v155 = vld [vmem:[#allocation5 + $0x8] sm:$0xff]
    %v156 = vld [vmem:[#allocation5 + $0x10] sm:$0xff]
    %v157 = vld [vmem:[#allocation5 + $0x18] sm:$0xff]
    %v158 = vld [vmem:[#allocation5 + $0x20] sm:$0xff]
    %v159 = vld [vmem:[#allocation5 + $0x28] sm:$0xff]
    %v160 = vld [vmem:[#allocation5 + $0x30] sm:$0xff]
    %v161 = vld [vmem:[#allocation5 + $0x38] sm:$0xff]
    %v162 = vld [vmem:[#allocation5 + $0x40] sm:$0xff]
    %v163 = vld [vmem:[#allocation5 + $0x48] sm:$0xff]
    %v164 = vld [vmem:[#allocation5 + $0x50] sm:$0xff]
    %v165 = vld [vmem:[#allocation5 + $0x58] sm:$0xff]
    %v166 = vld [vmem:[#allocation5 + $0x60] sm:$0xff]
    %v167 = vld [vmem:[#allocation5 + $0x68] sm:$0xff]
    %v168 = vld [vmem:[#allocation5 + $0x70] sm:$0xff]
    %v169 = vld [vmem:[#allocation5 + $0x78] sm:$0xff]
    %v170 = vld [vmem:[%s4] sm:$0x1]
    %v172 = vlaneseq
    %v173 = vshrl.u32 %v172, 7
    %v174 = vsub.s32 0, %v173
    %v175 = vrot.slane %v170, %v174
    %177 = vmatprep.subr.mxu0 0.0
    %178 = vmatpush1.msra.mxu0 %v169
    %179 = vmatprep.subr.mxu0 0.0
    %180 = vmatpush1.msra.mxu0 %v168
    %181 = vmatprep.subr.mxu0 0.0
    %182 = vmatpush1.msra.mxu0 %v167
    %183 = vmatprep.subr.mxu0 0.0
    %184 = vmatpush1.msra.mxu0 %v166
    %185 = vmatprep.subr.mxu0 0.0
    %186 = vmatpush1.msra.mxu0 %v165
    %187 = vmatprep.subr.mxu0 0.0
    %188 = vmatpush1.msra.mxu0 %v164
    %189 = vmatprep.subr.mxu0 0.0
    %190 = vmatpush1.msra.mxu0 %v163
    %191 = vmatprep.subr.mxu0 0.0
    %192 = vmatpush1.msra.mxu0 %v162
    %193 = vmatprep.subr.mxu0 0.0
    %194 = vmatpush1.msra.mxu0 %v161
    %195 = vmatprep.subr.mxu0 0.0
    %196 = vmatpush1.msra.mxu0 %v160
    %197 = vmatprep.subr.mxu0 0.0
    %198 = vmatpush1.msra.mxu0 %v159
    %199 = vmatprep.subr.mxu0 0.0
    %200 = vmatpush1.msra.mxu0 %v158
    %201 = vmatprep.subr.mxu0 0.0
    %202 = vmatpush1.msra.mxu0 %v157
    %203 = vmatprep.subr.mxu0 0.0
    %204 = vmatpush1.msra.mxu0 %v156
    %205 = vmatprep.subr.mxu0 0.0
    %206 = vmatpush1.msra.mxu0 %v155
    %207 = vmatprep.subr.mxu0 0.0
    %208 = vmatpush1.msra.mxu0 %v154
    %209 = vmatprep.subr.mxu0 0.0
    %210 = vmatpush2.msra.mxu0 0.0
    %211 = vmatprep.subr.mxu0 0.0
    %212 = vmatpush2.msra.mxu0 0.0
    %213 = vmatprep.subr.mxu0 0.0
    %214 = vmatpush2.msra.mxu0 0.0
    %215 = vmatprep.subr.mxu0 0.0
    %216 = vmatpush2.msra.mxu0 0.0
    %217 = vmatprep.subr.mxu0 0.0
    %218 = vmatpush2.msra.mxu0 0.0
    %219 = vmatprep.subr.mxu0 0.0
    %220 = vmatpush2.msra.mxu0 0.0
    %221 = vmatprep.subr.mxu0 0.0
    %222 = vmatpush2.msra.mxu0 0.0
    %223 = vmatprep.subr.mxu0 0.0
    %224 = vmatpush2.msra.mxu0 0.0
    %225 = vmatprep.subr.mxu0 0.0
    %226 = vmatpush2.msra.mxu0 0.0
    %227 = vmatprep.subr.mxu0 0.0
    %228 = vmatpush2.msra.mxu0 0.0
    %229 = vmatprep.subr.mxu0 0.0
    %230 = vmatpush2.msra.mxu0 0.0
    %231 = vmatprep.subr.mxu0 0.0
    %232 = vmatpush2.msra.mxu0 0.0
    %233 = vmatprep.subr.mxu0 0.0
    %234 = vmatpush2.msra.mxu0 0.0
    %235 = vmatprep.subr.mxu0 0.0
    %236 = vmatpush2.msra.mxu0 0.0
    %237 = vmatprep.subr.mxu0 0.0
    %238 = vmatpush2.msra.mxu0 0.0
    %239 = vmatprep.subr.mxu0 0.0
    %240 = vmatpush2.msra.mxu0 0.0
    %241 = vmatprep.mubr.f32.mxu0 0.0
    %242 = vmatmul.mubr.f32.gmra.mxu0 %v152
    %v243 = vpop.f32.mrf.mxu0
    %v244 = vadd.f32 %v175, %v243
    %v245 = vpop.f32.mrf.mxu0
    %246 = vmatprep.mubr.f32.mxu0 0.0
    %247 = vmatmul.mubr.f32.gmra.mxu0 %v153
    %v248 = vpop.f32.mrf.mxu0
    %v249 = vadd.f32 %v175, %v248
    %v250 = vpop.f32.mrf.mxu0
    %251 = vdwg.mxu0
    %v252 = vlaneseq
    %v253 = vand.u32 %v252, 127
    %v254 = vld [vmem:[%s5] sm:$0xff]
    %v255 = vld [vmem:[%s5 + $0x8] sm:$0xff]
    %v256 = vsub.s32 %v254, 1
    %v257 = vsub.s32 %v255, 1
    %v258 = vmul.u32 %v256, 4
    %v259 = vmul.u32 %v257, 4
    %v260 = vadd.s32 %v258, 4
    %v261 = vadd.s32 %v259, 4
    %262 = vset.pattern.permute.xlu0 0
    %263 = vperm.xlu0 %262, %v258
    %v264 = vpop.permute.xlu0 %263
    %265 = vset.pattern.permute.xlu0 0
    %266 = vperm.xlu0 %265, %v259
    %v267 = vpop.permute.xlu0 %266
    %vm268 = vcmp.ge.s32.totalorder %v253, %v264
    %vm269 = vcmp.ge.s32.totalorder %v253, %v267
    %270 = vset.pattern.permute.xlu0 0
    %271 = vperm.xlu0 %270, %v260
    %v272 = vpop.permute.xlu0 %271
    %273 = vset.pattern.permute.xlu0 0
    %274 = vperm.xlu0 %273, %v261
    %v275 = vpop.permute.xlu0 %274
    %vm276 = vcmp.lt.s32.totalorder %v253, %v272
    %vm277 = vcmp.lt.s32.totalorder %v253, %v275
    %vm278 = vmand %vm268, %vm276
    %vm279 = vmand %vm269, %vm277
    %v280 = vsel %vm278, %v244, -1e+11
    %v281 = vsel %vm279, %v249, -1e+11
    %282 = vst [vmem:[#allocation7] sm:$0xff] %v280
    %283 = vst [vmem:[#allocation7 + $0x8] sm:$0xff] %v281
    // Predicated region
    $region34: #{tpu_custom_call.1} parent=1 // pred_check
      _
    $region35: #{tpu_custom_call.1} parent=1 // pred_check_branch
      %285 = sbr.rel (0) target = $region37
    $region36: #{tpu_custom_call.1} parent=1 // pred_region
      %s287 = ssub.s32 256, 256
      %288 = vsyncadd [#allocation4], %s287
      %s289 = sshll.u32 [#allocation7], 4
      %s290 = int_to_ptr.vmem [resolvable:$true] %s289
      %295 = dma.vmem_to_hbm [thread:$0]  %s290, 256, %s6, [#allocation4], 128, 128, 8
    $region37: #{tpu_custom_call.1} parent=1 // pred_fallthru
      _
    // Predicated region
    $region38: #{tpu_custom_call.1} parent=1 // pred_check
      _
    $region39: #{tpu_custom_call.1} parent=1 // pred_check_branch
      %297 = sbr.rel (0) target = $region41
    $region40: #{tpu_custom_call.1} parent=1 // pred_region
      %298 = dma.done [#allocation4], 256
    $region41: #{tpu_custom_call.1} parent=1 // pred_fallthru
      _
    %299 = vsyncpa [#allocation3], 1
    %300 = vsyncpa [#allocation6], 1
    %301 = vsyncpa [#allocation4], 1

</llo_original>
